<compile_context>
chip_gen: v7x
topology: tpu7x:2x2x1
jax: 0.10.0
libtpu: 0.0.40
codegen_flags: <defaults>
</compile_context>

<pallas_src>
import math

import jax
import jax.numpy as jnp
from jax import lax
from jax.experimental import pallas as pl
from jax.experimental.pallas import tpu as pltpu


def _f32(v):
    return v if v.dtype == jnp.float32 else v.astype(jnp.float32)


def _layer_norm(x, gamma, beta, eps=1e-5):
    mu = jnp.mean(x, axis=-1, keepdims=True)
    var = jnp.mean((x - mu) ** 2, axis=-1, keepdims=True)
    return (x - mu) * lax.rsqrt(var + eps) * gamma + beta


def geo_encoder_kernel(x_ref, g1_ref, b1_ref, g2_ref, b2_ref,
                       w1_ref, bw1_ref, w2_ref, bw2_ref, o_ref):
    x = _f32(x_ref[...])                                  # (Bt, S, D)
    bt, s, d = x.shape

    g1, b1 = _f32(g1_ref[...]), _f32(b1_ref[...])
    g2, b2 = _f32(g2_ref[...]), _f32(b2_ref[...])

    # ---- sublayer 0: x + SA(LN1(x)) ----
    y = _layer_norm(x, g1, b1)                            # (Bt, S, D)
    ys = y * (1.0 / math.sqrt(d))                         # fold scale into lhs only
    # scores[b] = (y[b]/sqrt(D)) @ y[b]^T, no explicit transpose materialized
    scores = lax.dot_general(ys, y, (((2,), (2,)), ((0,), (0,))),
                             preferred_element_type=jnp.float32)    # (Bt, S, S)
    m = jnp.max(scores, axis=-1, keepdims=True)
    p = jnp.exp(scores - m)
    p = p * pl.reciprocal(jnp.sum(p, axis=-1, keepdims=True), approx=True)
    attn = lax.dot_general(p, y, (((2,), (1,)), ((0,), (0,))),
                           preferred_element_type=jnp.float32)      # (Bt, S, D)
    x1 = x + attn

    # ---- sublayer 1: x1 + FFN(LN2(x1)) — flatten tokens so MXU M = Bt*S ----
    z = _layer_norm(x1, g2, b2).reshape(bt * s, d)
    h = jnp.dot(z, _f32(w1_ref[...]),
                preferred_element_type=jnp.float32) + _f32(bw1_ref[...])
    h = jnp.maximum(h, 0.0)
    f = jnp.dot(h, _f32(w2_ref[...]),
                preferred_element_type=jnp.float32) + _f32(bw2_ref[...])

    out = x1.reshape(bt * s, d) + f
    o_ref[...] = out.reshape(bt, s, d).astype(o_ref.dtype)


def _vmem_estimate(bt, S, D, H):
    f = 4  # f32 bytes
    blk = bt * S * D * f
    scores = bt * S * S * f
    hidden = bt * S * H * f
    weights = (2 * D * H + 2 * H + 6 * D) * f
    # double-buffered in/out blocks + in-kernel temporaries + weights
    return 6 * blk + 3 * blk + scores + hidden + 2 * weights


def _choose_bt(B, S, D, H, vmem_budget_bytes=40 << 20, target_m=256):
    """Largest divisor of B that fits the VMEM budget; stop once MXU M-dim is fed."""
    best = 1
    for bt in range(1, B + 1):
        if B % bt:
            continue
        if _vmem_estimate(bt, S, D, H) > vmem_budget_bytes:
            break
        best = bt
        if bt * S >= target_m:
            break
    return best


def geo_encoder_layer(x, params, block_batch=None):
    """x: (B, S, D). params: gamma/beta for 2 LayerNorms + FFN weights (in,out)."""
    B, S, D = x.shape
    H = params["w1"].shape[1]
    Bt = block_batch if block_batch is not None else _choose_bt(B, S, D, H)
    assert B % Bt == 0, "block_batch must divide the batch dimension"

    full = lambda shape: pl.BlockSpec(shape, lambda b: (0,) * len(shape))
    vmem_limit = int(min(max(2 * _vmem_estimate(Bt, S, D, H), 16 << 20), 48 << 20))

    return pl.pallas_call(
        geo_encoder_kernel,
        out_shape=jax.ShapeDtypeStruct((B, S, D), x.dtype),
        grid_spec=pltpu.PrefetchScalarGridSpec(
            num_scalar_prefetch=0,
            grid=(B // Bt,),
            in_specs=[
                pl.BlockSpec((Bt, S, D), lambda b: (b, 0, 0)),  # x
                full((1, D)),   # ln1 gamma
                full((1, D)),   # ln1 beta
                full((1, D)),   # ln2 gamma
                full((1, D)),   # ln2 beta
                full((D, H)),   # w1
                full((1, H)),   # b1
                full((H, D)),   # w2
                full((1, D)),   # b2
            ],
            out_specs=pl.BlockSpec((Bt, S, D), lambda b: (b, 0, 0)),
        ),
        compiler_params=pltpu.CompilerParams(
            dimension_semantics=("parallel",),
            vmem_limit_bytes=vmem_limit),
    )(x,
      params["ln1_g"], params["ln1_b"], params["ln2_g"], params["ln2_b"],
      params["w1"], params["b1"], params["w2"], params["b2"])


def reference(x, params):
    """Pure-JAX reference matching the PyTorch forward (eval mode)."""
    xf = x.astype(jnp.float32)
    g1, b1 = params["ln1_g"][0], params["ln1_b"][0]
    g2, b2 = params["ln2_g"][0], params["ln2_b"][0]
    d = x.shape[-1]

    y = _layer_norm(xf, g1, b1)
    scores = jnp.einsum("bsd,btd->bst", y, y) / math.sqrt(d)
    prob = jax.nn.softmax(scores, axis=-1)
    x1 = xf + jnp.einsum("bst,btd->bsd", prob, y)

    z = _layer_norm(x1, g2, b2)
    h = jnp.maximum(z @ params["w1"] + params["b1"][0], 0.0)
    return x1 + (h @ params["w2"] + params["b2"][0])


if __name__ == "__main__":
    B, S, D = 2, 8, 32
    EXP = 4
    H = EXP * D

    key = jax.random.PRNGKey(0)
    kx, kw1, kb1, kw2, kb2 = jax.random.split(key, 5)

    x = jax.random.normal(kx, (B, S, D), dtype=jnp.float32)

    # LayerNorm default gamma=1, beta=0; FFN linears ~ PyTorch-style uniform init.
    bound1 = 1.0 / math.sqrt(D)
    bound2 = 1.0 / math.sqrt(H)
    params = {
        "ln1_g": jnp.ones((1, D), jnp.float32),
        "ln1_b": jnp.zeros((1, D), jnp.float32),
        "ln2_g": jnp.ones((1, D), jnp.float32),
        "ln2_b": jnp.zeros((1, D), jnp.float32),
        "w1": jax.random.uniform(kw1, (D, H), jnp.float32, -bound1, bound1),
        "b1": jax.random.uniform(kb1, (1, H), jnp.float32, -bound1, bound1),
        "w2": jax.random.uniform(kw2, (H, D), jnp.float32, -bound2, bound2),
        "b2": jax.random.uniform(kb2, (1, D), jnp.float32, -bound2, bound2),
    }

    out = jax.block_until_ready(geo_encoder_layer(x, params))
    ref = jax.block_until_ready(reference(x, params))

    assert out.shape == (B, S, D)
    # Tolerance loosened slightly for the approx (EUP) softmax reciprocal.
    assert jnp.allclose(out, ref, atol=2e-3, rtol=2e-3), "mismatch vs reference"
    print("KERNEL_OK")
</pallas_src>

<mosaic_0001>
module attributes {stable_mosaic.version = 11 : i64} {
  func.func @geo_encoder_kernel(%arg0: i32, %arg1: memref<2x8x32xf32, #tpu.memory_space<vmem>>, %arg2: memref<1x32xf32, #tpu.memory_space<vmem>>, %arg3: memref<1x32xf32, #tpu.memory_space<vmem>>, %arg4: memref<1x32xf32, #tpu.memory_space<vmem>>, %arg5: memref<1x32xf32, #tpu.memory_space<vmem>>, %arg6: memref<32x128xf32, #tpu.memory_space<vmem>>, %arg7: memref<1x128xf32, #tpu.memory_space<vmem>>, %arg8: memref<128x32xf32, #tpu.memory_space<vmem>>, %arg9: memref<1x32xf32, #tpu.memory_space<vmem>>, %arg10: memref<2x8x32xf32, #tpu.memory_space<vmem>>) attributes {dimension_semantics = [#tpu.dimension_semantics<parallel>], iteration_bounds = array<i64: 1>, scalar_prefetch = 0 : i64, scratch_operands = 0 : i64, tpu.core_type = #tpu.core_type<tc>, window_params = [{transform_indices = @transform_0, window_bounds = array<i64: 2, 8, 32>}, {pipeline_mode = #tpu.pipeline_mode<synchronous>, transform_indices = @transform_1, window_bounds = array<i64: 1, 32>}, {pipeline_mode = #tpu.pipeline_mode<synchronous>, transform_indices = @transform_2, window_bounds = array<i64: 1, 32>}, {pipeline_mode = #tpu.pipeline_mode<synchronous>, transform_indices = @transform_3, window_bounds = array<i64: 1, 32>}, {pipeline_mode = #tpu.pipeline_mode<synchronous>, transform_indices = @transform_4, window_bounds = array<i64: 1, 32>}, {pipeline_mode = #tpu.pipeline_mode<synchronous>, transform_indices = @transform_5, window_bounds = array<i64: 32, 128>}, {pipeline_mode = #tpu.pipeline_mode<synchronous>, transform_indices = @transform_6, window_bounds = array<i64: 1, 128>}, {pipeline_mode = #tpu.pipeline_mode<synchronous>, transform_indices = @transform_7, window_bounds = array<i64: 128, 32>}, {pipeline_mode = #tpu.pipeline_mode<synchronous>, transform_indices = @transform_8, window_bounds = array<i64: 1, 32>}, {transform_indices = @transform_9, window_bounds = array<i64: 2, 8, 32>}]} {
    %c0 = arith.constant 0 : index
    %c0_0 = arith.constant 0 : index
    %c0_1 = arith.constant 0 : index
    %0 = vector.load %arg1[%c0, %c0_0, %c0_1] : memref<2x8x32xf32, #tpu.memory_space<vmem>>, vector<2x8x32xf32>
    %c0_2 = arith.constant 0 : index
    %c0_3 = arith.constant 0 : index
    %1 = vector.load %arg2[%c0_2, %c0_3] : memref<1x32xf32, #tpu.memory_space<vmem>>, vector<1x32xf32>
    %c0_4 = arith.constant 0 : index
    %c0_5 = arith.constant 0 : index
    %2 = vector.load %arg3[%c0_4, %c0_5] : memref<1x32xf32, #tpu.memory_space<vmem>>, vector<1x32xf32>
    %c0_6 = arith.constant 0 : index
    %c0_7 = arith.constant 0 : index
    %3 = vector.load %arg4[%c0_6, %c0_7] : memref<1x32xf32, #tpu.memory_space<vmem>>, vector<1x32xf32>
    %c0_8 = arith.constant 0 : index
    %c0_9 = arith.constant 0 : index
    %4 = vector.load %arg5[%c0_8, %c0_9] : memref<1x32xf32, #tpu.memory_space<vmem>>, vector<1x32xf32>
    %cst = arith.constant dense<0.000000e+00> : vector<2x8xf32>
    %5 = vector.multi_reduction <add>, %0, %cst [2] : vector<2x8x32xf32> to vector<2x8xf32>
    %6 = vector.shape_cast %5 : vector<2x8xf32> to vector<2x8x1xf32>
    %cst_10 = arith.constant 3.200000e+01 : f32
    %7 = vector.broadcast %cst_10 : f32 to vector<2x8x1xf32>
    %8 = arith.divf %6, %7 : vector<2x8x1xf32>
    %9 = vector.broadcast %8 : vector<2x8x1xf32> to vector<2x8x32xf32>
    %10 = arith.subf %0, %9 : vector<2x8x32xf32>
    %11 = arith.mulf %10, %10 : vector<2x8x32xf32>
    %cst_11 = arith.constant dense<0.000000e+00> : vector<2x8xf32>
    %12 = vector.multi_reduction <add>, %11, %cst_11 [2] : vector<2x8x32xf32> to vector<2x8xf32>
    %13 = vector.shape_cast %12 : vector<2x8xf32> to vector<2x8x1xf32>
    %cst_12 = arith.constant 3.200000e+01 : f32
    %14 = vector.broadcast %cst_12 : f32 to vector<2x8x1xf32>
    %15 = arith.divf %13, %14 : vector<2x8x1xf32>
    %16 = vector.broadcast %8 : vector<2x8x1xf32> to vector<2x8x32xf32>
    %17 = arith.subf %0, %16 : vector<2x8x32xf32>
    %cst_13 = arith.constant 9.99999974E-6 : f32
    %18 = vector.broadcast %cst_13 : f32 to vector<2x8x1xf32>
    %19 = arith.addf %15, %18 : vector<2x8x1xf32>
    %20 = math.rsqrt %19 : vector<2x8x1xf32>
    %21 = vector.broadcast %20 : vector<2x8x1xf32> to vector<2x8x32xf32>
    %22 = arith.mulf %17, %21 : vector<2x8x32xf32>
    %23 = vector.shape_cast %1 : vector<1x32xf32> to vector<1x1x32xf32>
    %24 = vector.broadcast %23 : vector<1x1x32xf32> to vector<2x8x32xf32>
    %25 = arith.mulf %22, %24 : vector<2x8x32xf32>
    %26 = vector.shape_cast %2 : vector<1x32xf32> to vector<1x1x32xf32>
    %27 = vector.broadcast %26 : vector<1x1x32xf32> to vector<2x8x32xf32>
    %28 = arith.addf %25, %27 : vector<2x8x32xf32>
    %cst_14 = arith.constant 0.176776692 : f32
    %29 = vector.broadcast %cst_14 : f32 to vector<2x8x32xf32>
    %30 = arith.mulf %28, %29 : vector<2x8x32xf32>
    %cst_15 = arith.constant dense<0.000000e+00> : vector<2x8x8xf32>
    %31 = tpu.matmul %30, %28, %cst_15 {dimension_numbers = #tpu.dot_dimension_numbers<[2], [2], [1], [1], [0, 0, 0, 1, 1, 1], [0], [0]>} : vector<2x8x32xf32>, vector<2x8x32xf32>, vector<2x8x8xf32> -> vector<2x8x8xf32>
    %cst_16 = arith.constant dense<0xFF800000> : vector<2x8xf32>
    %32 = vector.multi_reduction <maximumf>, %31, %cst_16 [2] : vector<2x8x8xf32> to vector<2x8xf32>
    %33 = vector.shape_cast %32 : vector<2x8xf32> to vector<2x8x1xf32>
    %34 = vector.broadcast %33 : vector<2x8x1xf32> to vector<2x8x8xf32>
    %35 = arith.subf %31, %34 : vector<2x8x8xf32>
    %36 = math.exp %35 : vector<2x8x8xf32>
    %cst_17 = arith.constant dense<0.000000e+00> : vector<2x8xf32>
    %37 = vector.multi_reduction <add>, %36, %cst_17 [2] : vector<2x8x8xf32> to vector<2x8xf32>
    %38 = vector.shape_cast %37 : vector<2x8xf32> to vector<2x8x1xf32>
    %39 = tpu.reciprocal %38 {approx = true} : vector<2x8x1xf32> -> vector<2x8x1xf32>
    %40 = vector.broadcast %39 : vector<2x8x1xf32> to vector<2x8x8xf32>
    %41 = arith.mulf %36, %40 : vector<2x8x8xf32>
    %cst_18 = arith.constant dense<0.000000e+00> : vector<2x8x32xf32>
    %42 = tpu.matmul %41, %28, %cst_18 {dimension_numbers = #tpu.dot_dimension_numbers<[2], [1], [1], [2], [0, 0, 0, 1, 1, 2], [0], [0]>} : vector<2x8x8xf32>, vector<2x8x32xf32>, vector<2x8x32xf32> -> vector<2x8x32xf32>
    %43 = arith.addf %0, %42 : vector<2x8x32xf32>
    %cst_19 = arith.constant dense<0.000000e+00> : vector<2x8xf32>
    %44 = vector.multi_reduction <add>, %43, %cst_19 [2] : vector<2x8x32xf32> to vector<2x8xf32>
    %45 = vector.shape_cast %44 : vector<2x8xf32> to vector<2x8x1xf32>
    %cst_20 = arith.constant 3.200000e+01 : f32
    %46 = vector.broadcast %cst_20 : f32 to vector<2x8x1xf32>
    %47 = arith.divf %45, %46 : vector<2x8x1xf32>
    %48 = vector.broadcast %47 : vector<2x8x1xf32> to vector<2x8x32xf32>
    %49 = arith.subf %43, %48 : vector<2x8x32xf32>
    %50 = arith.mulf %49, %49 : vector<2x8x32xf32>
    %cst_21 = arith.constant dense<0.000000e+00> : vector<2x8xf32>
    %51 = vector.multi_reduction <add>, %50, %cst_21 [2] : vector<2x8x32xf32> to vector<2x8xf32>
    %52 = vector.shape_cast %51 : vector<2x8xf32> to vector<2x8x1xf32>
    %cst_22 = arith.constant 3.200000e+01 : f32
    %53 = vector.broadcast %cst_22 : f32 to vector<2x8x1xf32>
    %54 = arith.divf %52, %53 : vector<2x8x1xf32>
    %55 = vector.broadcast %47 : vector<2x8x1xf32> to vector<2x8x32xf32>
    %56 = arith.subf %43, %55 : vector<2x8x32xf32>
    %cst_23 = arith.constant 9.99999974E-6 : f32
    %57 = vector.broadcast %cst_23 : f32 to vector<2x8x1xf32>
    %58 = arith.addf %54, %57 : vector<2x8x1xf32>
    %59 = math.rsqrt %58 : vector<2x8x1xf32>
    %60 = vector.broadcast %59 : vector<2x8x1xf32> to vector<2x8x32xf32>
    %61 = arith.mulf %56, %60 : vector<2x8x32xf32>
    %62 = vector.shape_cast %3 : vector<1x32xf32> to vector<1x1x32xf32>
    %63 = vector.broadcast %62 : vector<1x1x32xf32> to vector<2x8x32xf32>
    %64 = arith.mulf %61, %63 : vector<2x8x32xf32>
    %65 = vector.shape_cast %4 : vector<1x32xf32> to vector<1x1x32xf32>
    %66 = vector.broadcast %65 : vector<1x1x32xf32> to vector<2x8x32xf32>
    %67 = arith.addf %64, %66 : vector<2x8x32xf32>
    %68 = vector.shape_cast %67 : vector<2x8x32xf32> to vector<16x32xf32>
    %c0_24 = arith.constant 0 : index
    %c0_25 = arith.constant 0 : index
    %69 = vector.load %arg6[%c0_24, %c0_25] : memref<32x128xf32, #tpu.memory_space<vmem>>, vector<32x128xf32>
    %cst_26 = arith.constant dense<0.000000e+00> : vector<16x128xf32>
    %70 = tpu.matmul %68, %69, %cst_26 {dimension_numbers = #tpu.dot_dimension_numbers<[1], [0], [0], [1], [0, 0, 1, 1], [], []>} : vector<16x32xf32>, vector<32x128xf32>, vector<16x128xf32> -> vector<16x128xf32>
    %c0_27 = arith.constant 0 : index
    %c0_28 = arith.constant 0 : index
    %71 = vector.load %arg7[%c0_27, %c0_28] : memref<1x128xf32, #tpu.memory_space<vmem>>, vector<1x128xf32>
    %72 = vector.broadcast %71 : vector<1x128xf32> to vector<16x128xf32>
    %73 = arith.addf %70, %72 : vector<16x128xf32>
    %cst_29 = arith.constant 0.000000e+00 : f32
    %74 = vector.broadcast %cst_29 : f32 to vector<16x128xf32>
    %75 = arith.maximumf %73, %74 : vector<16x128xf32>
    %c0_30 = arith.constant 0 : index
    %c0_31 = arith.constant 0 : index
    %76 = vector.load %arg8[%c0_30, %c0_31] : memref<128x32xf32, #tpu.memory_space<vmem>>, vector<128x32xf32>
    %cst_32 = arith.constant dense<0.000000e+00> : vector<16x32xf32>
    %77 = tpu.matmul %75, %76, %cst_32 {dimension_numbers = #tpu.dot_dimension_numbers<[1], [0], [0], [1], [0, 0, 1, 1], [], []>} : vector<16x128xf32>, vector<128x32xf32>, vector<16x32xf32> -> vector<16x32xf32>
    %c0_33 = arith.constant 0 : index
    %c0_34 = arith.constant 0 : index
    %78 = vector.load %arg9[%c0_33, %c0_34] : memref<1x32xf32, #tpu.memory_space<vmem>>, vector<1x32xf32>
    %79 = vector.broadcast %78 : vector<1x32xf32> to vector<16x32xf32>
    %80 = arith.addf %77, %79 : vector<16x32xf32>
    %81 = vector.shape_cast %43 : vector<2x8x32xf32> to vector<16x32xf32>
    %82 = arith.addf %81, %80 : vector<16x32xf32>
    %83 = vector.shape_cast %82 : vector<16x32xf32> to vector<2x8x32xf32>
    %c0_35 = arith.constant 0 : index
    %c0_36 = arith.constant 0 : index
    %c0_37 = arith.constant 0 : index
    %84 = vector.load %arg10[%c0_35, %c0_36, %c0_37] : memref<2x8x32xf32, #tpu.memory_space<vmem>>, vector<2x8x32xf32>
    tpu.vector_store %arg10[%c0_35, %c0_36, %c0_37], %83 {strides = array<i32>} : memref<2x8x32xf32, #tpu.memory_space<vmem>>, vector<2x8x32xf32>,
    return
  }
  func.func @transform_0(%arg0: i32) -> (i32, i32, i32) {
    %c0_i32 = arith.constant 0 : i32
    %c0_i32_0 = arith.constant 0 : i32
    %c0_i32_1 = arith.constant 0 : i32
    return %arg0, %c0_i32, %c0_i32_0 : i32, i32, i32
  }
  func.func @transform_1(%arg0: i32) -> (i32, i32) {
    %c0_i32 = arith.constant 0 : i32
    %c0_i32_0 = arith.constant 0 : i32
    %c0_i32_1 = arith.constant 0 : i32
    return %c0_i32, %c0_i32_0 : i32, i32
  }
  func.func @transform_2(%arg0: i32) -> (i32, i32) {
    %c0_i32 = arith.constant 0 : i32
    %c0_i32_0 = arith.constant 0 : i32
    %c0_i32_1 = arith.constant 0 : i32
    return %c0_i32, %c0_i32_0 : i32, i32
  }
  func.func @transform_3(%arg0: i32) -> (i32, i32) {
    %c0_i32 = arith.constant 0 : i32
    %c0_i32_0 = arith.constant 0 : i32
    %c0_i32_1 = arith.constant 0 : i32
    return %c0_i32, %c0_i32_0 : i32, i32
  }
  func.func @transform_4(%arg0: i32) -> (i32, i32) {
    %c0_i32 = arith.constant 0 : i32
    %c0_i32_0 = arith.constant 0 : i32
    %c0_i32_1 = arith.constant 0 : i32
    return %c0_i32, %c0_i32_0 : i32, i32
  }
  func.func @transform_5(%arg0: i32) -> (i32, i32) {
    %c0_i32 = arith.constant 0 : i32
    %c0_i32_0 = arith.constant 0 : i32
    %c0_i32_1 = arith.constant 0 : i32
    return %c0_i32, %c0_i32_0 : i32, i32
  }
  func.func @transform_6(%arg0: i32) -> (i32, i32) {
    %c0_i32 = arith.constant 0 : i32
    %c0_i32_0 = arith.constant 0 : i32
    %c0_i32_1 = arith.constant 0 : i32
    return %c0_i32, %c0_i32_0 : i32, i32
  }
  func.func @transform_7(%arg0: i32) -> (i32, i32) {
    %c0_i32 = arith.constant 0 : i32
    %c0_i32_0 = arith.constant 0 : i32
    %c0_i32_1 = arith.constant 0 : i32
    return %c0_i32, %c0_i32_0 : i32, i32
  }
  func.func @transform_8(%arg0: i32) -> (i32, i32) {
    %c0_i32 = arith.constant 0 : i32
    %c0_i32_0 = arith.constant 0 : i32
    %c0_i32_1 = arith.constant 0 : i32
    return %c0_i32, %c0_i32_0 : i32, i32
  }
  func.func @transform_9(%arg0: i32) -> (i32, i32, i32) {
    %c0_i32 = arith.constant 0 : i32
    %c0_i32_0 = arith.constant 0 : i32
    %c0_i32_1 = arith.constant 0 : i32
    return %arg0, %c0_i32, %c0_i32_0 : i32, i32, i32
  }
}

</mosaic_0001>

<llo_original>
// kernel: tpu_custom_call.1
$region0: #{tpu_custom_call.1}
  #allocation0 [shape = 'u32[]', space=smem, size = 0x4, offset = 0x4, fixed_abs, tag = 'smem constant byte address 0x4 - core index']
  #allocation1 [shape = 'u32[144,128]{1,0:T(1,128)}', space=vmem, size = 0x12000, scoped, tag = 'internal scratch']
  %s0 = inlined_call_operand.vmem [shape: f32[2,8,32], index: 0, kind: input, shape index: {}]
  %s1 = inlined_call_operand.vmem [shape: f32[1,32], index: 1, kind: input, shape index: {}]
  %s2 = inlined_call_operand.vmem [shape: f32[1,32], index: 2, kind: input, shape index: {}]
  %s3 = inlined_call_operand.vmem [shape: f32[1,32], index: 3, kind: input, shape index: {}]
  %s4 = inlined_call_operand.vmem [shape: f32[1,32], index: 4, kind: input, shape index: {}]
  %s5 = inlined_call_operand.vmem [shape: f32[32,128], index: 5, kind: input, shape index: {}]
  %s6 = inlined_call_operand.vmem [shape: f32[1,128], index: 6, kind: input, shape index: {}]
  %s7 = inlined_call_operand.vmem [shape: f32[128,32], index: 7, kind: input, shape index: {}]
  %s8 = inlined_call_operand.vmem [shape: f32[1,32], index: 8, kind: input, shape index: {}]
  %s9 = inlined_call_operand.hbm [shape: f32[2,8,32], index: 9, kind: output, shape index: {}]
  %s10 = sld [smem:[#allocation0]]
  $region46: #{tpu_custom_call.1} parent=0
    _
  %s12 = ssub.s32 1, %s10
  %s13 = scalar_select 0, %s12, %s10
  $region1: #{tpu_custom_call.1} parent=0
    #allocation2 [shape = 'u8[8192]{0}', space=vmem, size = 0x2000, scoped, tag = 'output window, operand 0, single buffered']
    #allocation3 [shape = 's32[1]{0}', space=sflag, size = 0x4, scoped, tag = 'scoped memory for tpu_custom_call.1']
    %14 = vsyncpa [#allocation3], 0
    // Predicated region
    $region2: #{tpu_custom_call.1} parent=1 // pred_check
      _
    $region3: #{tpu_custom_call.1} parent=1 // pred_check_branch
      %16 = sbr.rel (0) target = $region5
    $region4: #{tpu_custom_call.1} parent=1 // pred_region
      _
    $region5: #{tpu_custom_call.1} parent=1 // pred_fallthru
      _
    // Predicated region
    $region6: #{tpu_custom_call.1} parent=1 // pred_check
      _
    $region7: #{tpu_custom_call.1} parent=1 // pred_check_branch
      %18 = sbr.rel (0) target = $region9
    $region8: #{tpu_custom_call.1} parent=1 // pred_region
      _
    $region9: #{tpu_custom_call.1} parent=1 // pred_fallthru
      _
    // Predicated region
    $region10: #{tpu_custom_call.1} parent=1 // pred_check
      _
    $region11: #{tpu_custom_call.1} parent=1 // pred_check_branch
      %20 = sbr.rel (0) target = $region13
    $region12: #{tpu_custom_call.1} parent=1 // pred_region
      _
    $region13: #{tpu_custom_call.1} parent=1 // pred_fallthru
      _
    // Predicated region
    $region14: #{tpu_custom_call.1} parent=1 // pred_check
      _
    $region15: #{tpu_custom_call.1} parent=1 // pred_check_branch
      %22 = sbr.rel (0) target = $region17
    $region16: #{tpu_custom_call.1} parent=1 // pred_region
      _
    $region17: #{tpu_custom_call.1} parent=1 // pred_fallthru
      _
    // Predicated region
    $region18: #{tpu_custom_call.1} parent=1 // pred_check
      _
    $region19: #{tpu_custom_call.1} parent=1 // pred_check_branch
      %24 = sbr.rel (0) target = $region21
    $region20: #{tpu_custom_call.1} parent=1 // pred_region
      _
    $region21: #{tpu_custom_call.1} parent=1 // pred_fallthru
      _
    // Predicated region
    $region22: #{tpu_custom_call.1} parent=1 // pred_check
      _
    $region23: #{tpu_custom_call.1} parent=1 // pred_check_branch
      %26 = sbr.rel (0) target = $region25
    $region24: #{tpu_custom_call.1} parent=1 // pred_region
      _
    $region25: #{tpu_custom_call.1} parent=1 // pred_fallthru
      _
    // Predicated region
    $region26: #{tpu_custom_call.1} parent=1 // pred_check
      _
    $region27: #{tpu_custom_call.1} parent=1 // pred_check_branch
      %28 = sbr.rel (0) target = $region29
    $region28: #{tpu_custom_call.1} parent=1 // pred_region
      _
    $region29: #{tpu_custom_call.1} parent=1 // pred_fallthru
      _
    // Predicated region
    $region30: #{tpu_custom_call.1} parent=1 // pred_check
      _
    $region31: #{tpu_custom_call.1} parent=1 // pred_check_branch
      %30 = sbr.rel (0) target = $region33
    $region32: #{tpu_custom_call.1} parent=1 // pred_region
      _
    $region33: #{tpu_custom_call.1} parent=1 // pred_fallthru
      _
    // Predicated region
    $region34: #{tpu_custom_call.1} parent=1 // pred_check
      _
    $region35: #{tpu_custom_call.1} parent=1 // pred_check_branch
      %32 = sbr.rel (0) target = $region37
    $region36: #{tpu_custom_call.1} parent=1 // pred_region
      _
    $region37: #{tpu_custom_call.1} parent=1 // pred_fallthru
      _
    %v33 = vld [vmem:[%s0] sm:$0xff]
    %v34 = vld [vmem:[%s0 + $0x8] sm:$0xff]
    %v35 = vld [vmem:[%s1] sm:$0x1]
    %v36 = vld [vmem:[%s2] sm:$0x1]
    %v37 = vld [vmem:[%s3] sm:$0x1]
    %v38 = vld [vmem:[%s4] sm:$0x1]
    %vm39 = vcmask 261120
    %v40 = vsel %vm39, %v33, 0.0
    %41 = vadd.xlane.f32.xlu0 %v40
    %v42 = vpop.xlane.xlu0 %41
    %v43 = vsel %vm39, %v34, 0.0
    %44 = vadd.xlane.f32.xlu0 %v43
    %v45 = vpop.xlane.xlu0 %44
    %v46 = vrcp.pop 32.0
    %v47 = vmul.f32 %v42, %v46
    %v48 = vmul.f32 %v45, %v46
    %v49 = vsub.f32 %v33, %v47
    %v50 = vsub.f32 %v34, %v48
    %v51 = vmul.f32 %v49, %v49
    %v52 = vmul.f32 %v50, %v50
    %v53 = vsel %vm39, %v51, 0.0
    %54 = vadd.xlane.f32.xlu0 %v53
    %v55 = vpop.xlane.xlu0 %54
    %v56 = vsel %vm39, %v52, 0.0
    %57 = vadd.xlane.f32.xlu0 %v56
    %v58 = vpop.xlane.xlu0 %57
    %v59 = vmul.f32 %v55, %v46
    %v60 = vmul.f32 %v58, %v46
    %v61 = vadd.f32 %v59, 1e-05
    %v62 = vadd.f32 %v60, 1e-05
    %v63 = vrsqrt.pop %v61
    %v64 = vrsqrt.pop %v62
    %v65 = vmul.f32 %v49, %v63
    %v66 = vmul.f32 %v50, %v64
    %v68 = vlaneseq
    %v69 = vshrl.u32 %v68, 7
    %v70 = vsub.s32 0, %v69
    %v71 = vrot.slane %v35, %v70
    %v73 = vmul.f32 %v65, %v71
    %v74 = vmul.f32 %v66, %v71
    %v76 = vlaneseq
    %v77 = vshrl.u32 %v76, 7
    %v78 = vsub.s32 0, %v77
    %v79 = vrot.slane %v36, %v78
    %v81 = vadd.f32 %v73, %v79
    %v82 = vadd.f32 %v74, %v79
    %v83 = vmul.f32 %v81, 0.17677669
    %v84 = vmul.f32 %v82, 0.17677669
    %v86 = vsel %vm39, %v83, 0
    %v89 = vsel %vm39, %v81, 0
    %91 = vmatprep.subr.mxu0 0.0
    %92 = vmatpush1.xpose.msra.mxu0 %v89
    %93 = vmatprep.subr.mxu0 0.0
    %94 = vmatpush1.xpose.msra.mxu0 0.0
    %95 = vmatprep.subr.mxu0 0.0
    %96 = vmatpush1.xpose.msra.mxu0 0.0
    %97 = vmatprep.subr.mxu0 0.0
    %98 = vmatpush1.xpose.msra.mxu0 0.0
    %99 = vmatprep.subr.mxu0 0.0
    %100 = vmatpush1.xpose.msra.mxu0 0.0
    %101 = vmatprep.subr.mxu0 0.0
    %102 = vmatpush1.xpose.msra.mxu0 0.0
    %103 = vmatprep.subr.mxu0 0.0
    %104 = vmatpush1.xpose.msra.mxu0 0.0
    %105 = vmatprep.subr.mxu0 0.0
    %106 = vmatpush1.xpose.msra.mxu0 0.0
    %107 = vmatprep.subr.mxu0 0.0
    %108 = vmatpush1.xpose.msra.mxu0 0.0
    %109 = vmatprep.subr.mxu0 0.0
    %110 = vmatpush1.xpose.msra.mxu0 0.0
    %111 = vmatprep.subr.mxu0 0.0
    %112 = vmatpush1.xpose.msra.mxu0 0.0
    %113 = vmatprep.subr.mxu0 0.0
    %114 = vmatpush1.xpose.msra.mxu0 0.0
    %115 = vmatprep.subr.mxu0 0.0
    %116 = vmatpush1.xpose.msra.mxu0 0.0
    %117 = vmatprep.subr.mxu0 0.0
    %118 = vmatpush1.xpose.msra.mxu0 0.0
    %119 = vmatprep.subr.mxu0 0.0
    %120 = vmatpush1.xpose.msra.mxu0 0.0
    %121 = vmatprep.subr.mxu0 0.0
    %122 = vmatpush1.xpose.msra.mxu0 0.0
    %123 = vmatprep.subr.mxu0 0.0
    %124 = vmatpush1.xpose.msra.mxu0 0.0
    %125 = vmatprep.subr.mxu0 0.0
    %126 = vmatpush1.xpose.msra.mxu0 0.0
    %127 = vmatprep.subr.mxu0 0.0
    %128 = vmatpush1.xpose.msra.mxu0 0.0
    %129 = vmatprep.subr.mxu0 0.0
    %130 = vmatpush1.xpose.msra.mxu0 0.0
    %131 = vmatprep.subr.mxu0 0.0
    %132 = vmatpush1.xpose.msra.mxu0 0.0
    %133 = vmatprep.subr.mxu0 0.0
    %134 = vmatpush1.xpose.msra.mxu0 0.0
    %135 = vmatprep.subr.mxu0 0.0
    %136 = vmatpush1.xpose.msra.mxu0 0.0
    %137 = vmatprep.subr.mxu0 0.0
    %138 = vmatpush1.xpose.msra.mxu0 0.0
    %139 = vmatprep.subr.mxu0 0.0
    %140 = vmatpush1.xpose.msra.mxu0 0.0
    %141 = vmatprep.subr.mxu0 0.0
    %142 = vmatpush1.xpose.msra.mxu0 0.0
    %143 = vmatprep.subr.mxu0 0.0
    %144 = vmatpush1.xpose.msra.mxu0 0.0
    %145 = vmatprep.subr.mxu0 0.0
    %146 = vmatpush1.xpose.msra.mxu0 0.0
    %147 = vmatprep.subr.mxu0 0.0
    %148 = vmatpush1.xpose.msra.mxu0 0.0
    %149 = vmatprep.subr.mxu0 0.0
    %150 = vmatpush1.xpose.msra.mxu0 0.0
    %151 = vmatprep.subr.mxu0 0.0
    %152 = vmatpush1.xpose.msra.mxu0 0.0
    %153 = vmatprep.subr.mxu0 0.0
    %154 = vmatpush1.xpose.msra.mxu0 0.0
    %155 = vmatprep.mubr.f32.mxu0 0.0
    %156 = vmatmul.mubr.f32.gmra.mrb[0].mxu0 %v86
    %v157 = vpop.f32.mrb[0].mxu0
    %v158 = vadd.f32 0.0, %v157
    %v159 = vpop.f32.mrb[0].mxu0
    %160 = vdwg.mxu0
    %v162 = vsel %vm39, %v84, 0
    %v165 = vsel %vm39, %v82, 0
    %167 = vmatprep.subr.mxu0 0.0
    %168 = vmatpush1.xpose.msra.mxu0 %v165
    %169 = vmatprep.subr.mxu0 0.0
    %170 = vmatpush1.xpose.msra.mxu0 0.0
    %171 = vmatprep.subr.mxu0 0.0
    %172 = vmatpush1.xpose.msra.mxu0 0.0
    %173 = vmatprep.subr.mxu0 0.0
    %174 = vmatpush1.xpose.msra.mxu0 0.0
    %175 = vmatprep.subr.mxu0 0.0
    %176 = vmatpush1.xpose.msra.mxu0 0.0
    %177 = vmatprep.subr.mxu0 0.0
    %178 = vmatpush1.xpose.msra.mxu0 0.0
    %179 = vmatprep.subr.mxu0 0.0
    %180 = vmatpush1.xpose.msra.mxu0 0.0
    %181 = vmatprep.subr.mxu0 0.0
    %182 = vmatpush1.xpose.msra.mxu0 0.0
    %183 = vmatprep.subr.mxu0 0.0
    %184 = vmatpush1.xpose.msra.mxu0 0.0
    %185 = vmatprep.subr.mxu0 0.0
    %186 = vmatpush1.xpose.msra.mxu0 0.0
    %187 = vmatprep.subr.mxu0 0.0
    %188 = vmatpush1.xpose.msra.mxu0 0.0
    %189 = vmatprep.subr.mxu0 0.0
    %190 = vmatpush1.xpose.msra.mxu0 0.0
    %191 = vmatprep.subr.mxu0 0.0
    %192 = vmatpush1.xpose.msra.mxu0 0.0
    %193 = vmatprep.subr.mxu0 0.0
    %194 = vmatpush1.xpose.msra.mxu0 0.0
    %195 = vmatprep.subr.mxu0 0.0
    %196 = vmatpush1.xpose.msra.mxu0 0.0
    %197 = vmatprep.subr.mxu0 0.0
    %198 = vmatpush1.xpose.msra.mxu0 0.0
    %199 = vmatprep.subr.mxu0 0.0
    %200 = vmatpush1.xpose.msra.mxu0 0.0
    %201 = vmatprep.subr.mxu0 0.0
    %202 = vmatpush1.xpose.msra.mxu0 0.0
    %203 = vmatprep.subr.mxu0 0.0
    %204 = vmatpush1.xpose.msra.mxu0 0.0
    %205 = vmatprep.subr.mxu0 0.0
    %206 = vmatpush1.xpose.msra.mxu0 0.0
    %207 = vmatprep.subr.mxu0 0.0
    %208 = vmatpush1.xpose.msra.mxu0 0.0
    %209 = vmatprep.subr.mxu0 0.0
    %210 = vmatpush1.xpose.msra.mxu0 0.0
    %211 = vmatprep.subr.mxu0 0.0
    %212 = vmatpush1.xpose.msra.mxu0 0.0
    %213 = vmatprep.subr.mxu0 0.0
    %214 = vmatpush1.xpose.msra.mxu0 0.0
    %215 = vmatprep.subr.mxu0 0.0
    %216 = vmatpush1.xpose.msra.mxu0 0.0
    %217 = vmatprep.subr.mxu0 0.0
    %218 = vmatpush1.xpose.msra.mxu0 0.0
    %219 = vmatprep.subr.mxu0 0.0
    %220 = vmatpush1.xpose.msra.mxu0 0.0
    %221 = vmatprep.subr.mxu0 0.0
    %222 = vmatpush1.xpose.msra.mxu0 0.0
    %223 = vmatprep.subr.mxu0 0.0
    %224 = vmatpush1.xpose.msra.mxu0 0.0
    %225 = vmatprep.subr.mxu0 0.0
    %226 = vmatpush1.xpose.msra.mxu0 0.0
    %227 = vmatprep.subr.mxu0 0.0
    %228 = vmatpush1.xpose.msra.mxu0 0.0
    %229 = vmatprep.subr.mxu0 0.0
    %230 = vmatpush1.xpose.msra.mxu0 0.0
    %231 = vmatprep.mubr.f32.mxu0 0.0
    %232 = vmatmul.mubr.f32.gmra.mrb[0].mxu0 %v162
    %v233 = vpop.f32.mrb[0].mxu0
    %v234 = vadd.f32 0.0, %v233
    %v235 = vpop.f32.mrb[0].mxu0
    %236 = vdwg.mxu0
    %vm237 = vcmask 64512
    %v238 = vsel %vm237, %v158, -inf
    %239 = vmax.xlane.f32.xlu0 %v238
    %v240 = vpop.xlane.xlu0 %239
    %v241 = vsel %vm237, %v234, -inf
    %242 = vmax.xlane.f32.xlu0 %v241
    %v243 = vpop.xlane.xlu0 %242
    %v244 = vsub.f32 %v158, %v240
    %v245 = vsub.f32 %v234, %v243
    %v246 = vmul.f32 %v244, 1.442695
    %v247 = vpow.pop %v246
    %v248 = vmul.f32 %v245, 1.442695
    %v249 = vpow.pop %v248
    %v250 = vsel %vm237, %v247, 0.0
    %251 = vadd.xlane.f32.xlu0 %v250
    %v252 = vpop.xlane.xlu0 %251
    %v253 = vsel %vm237, %v249, 0.0
    %254 = vadd.xlane.f32.xlu0 %v253
    %v255 = vpop.xlane.xlu0 %254
    %v256 = vrcp.pop %v252
    %v257 = vrcp.pop %v255
    %v258 = vmul.f32 %v247, %v256
    %v259 = vmul.f32 %v249, %v257
    %v261 = vsel %vm237, %v258, 0
    %263 = vmatprep.subr.mxu0 0.0
    %264 = vmatpush1.msra.mxu0 %v81
    %265 = vmatprep.subr.mxu0 0.0
    %266 = vmatpush1.msra.mxu0 0.0
    %267 = vmatprep.subr.mxu0 0.0
    %268 = vmatpush1.msra.mxu0 0.0
    %269 = vmatprep.subr.mxu0 0.0
    %270 = vmatpush1.msra.mxu0 0.0
    %271 = vmatprep.subr.mxu0 0.0
    %272 = vmatpush1.msra.mxu0 0.0
    %273 = vmatprep.subr.mxu0 0.0
    %274 = vmatpush1.msra.mxu0 0.0
    %275 = vmatprep.subr.mxu0 0.0
    %276 = vmatpush1.msra.mxu0 0.0
    %277 = vmatprep.subr.mxu0 0.0
    %278 = vmatpush1.msra.mxu0 0.0
    %279 = vmatprep.subr.mxu0 0.0
    %280 = vmatpush1.msra.mxu0 0.0
    %281 = vmatprep.subr.mxu0 0.0
    %282 = vmatpush1.msra.mxu0 0.0
    %283 = vmatprep.subr.mxu0 0.0
    %284 = vmatpush1.msra.mxu0 0.0
    %285 = vmatprep.subr.mxu0 0.0
    %286 = vmatpush1.msra.mxu0 0.0
    %287 = vmatprep.subr.mxu0 0.0
    %288 = vmatpush1.msra.mxu0 0.0
    %289 = vmatprep.subr.mxu0 0.0
    %290 = vmatpush1.msra.mxu0 0.0
    %291 = vmatprep.subr.mxu0 0.0
    %292 = vmatpush1.msra.mxu0 0.0
    %293 = vmatprep.subr.mxu0 0.0
    %294 = vmatpush1.msra.mxu0 0.0
    %295 = vmatprep.subr.mxu0 0.0
    %296 = vmatpush1.msra.mxu0 0.0
    %297 = vmatprep.subr.mxu0 0.0
    %298 = vmatpush1.msra.mxu0 0.0
    %299 = vmatprep.subr.mxu0 0.0
    %300 = vmatpush1.msra.mxu0 0.0
    %301 = vmatprep.subr.mxu0 0.0
    %302 = vmatpush1.msra.mxu0 0.0
    %303 = vmatprep.subr.mxu0 0.0
    %304 = vmatpush1.msra.mxu0 0.0
    %305 = vmatprep.subr.mxu0 0.0
    %306 = vmatpush1.msra.mxu0 0.0
    %307 = vmatprep.subr.mxu0 0.0
    %308 = vmatpush1.msra.mxu0 0.0
    %309 = vmatprep.subr.mxu0 0.0
    %310 = vmatpush1.msra.mxu0 0.0
    %311 = vmatprep.subr.mxu0 0.0
    %312 = vmatpush1.msra.mxu0 0.0
    %313 = vmatprep.subr.mxu0 0.0
    %314 = vmatpush1.msra.mxu0 0.0
    %315 = vmatprep.subr.mxu0 0.0
    %316 = vmatpush1.msra.mxu0 0.0
    %317 = vmatprep.subr.mxu0 0.0
    %318 = vmatpush1.msra.mxu0 0.0
    %319 = vmatprep.subr.mxu0 0.0
    %320 = vmatpush1.msra.mxu0 0.0
    %321 = vmatprep.subr.mxu0 0.0
    %322 = vmatpush1.msra.mxu0 0.0
    %323 = vmatprep.subr.mxu0 0.0
    %324 = vmatpush1.msra.mxu0 0.0
    %325 = vmatprep.subr.mxu0 0.0
    %326 = vmatpush1.msra.mxu0 0.0
    %327 = vmatprep.mubr.f32.mxu0 0.0
    %328 = vmatmul.mubr.f32.gmra.mrb[0].mxu0 %v261
    %v329 = vpop.f32.mrb[0].mxu0
    %v330 = vadd.f32 0.0, %v329
    %v331 = vpop.f32.mrb[0].mxu0
    %332 = vdwg.mxu0
    %v334 = vsel %vm237, %v259, 0
    %336 = vmatprep.subr.mxu0 0.0
    %337 = vmatpush1.msra.mxu0 %v82
    %338 = vmatprep.subr.mxu0 0.0
    %339 = vmatpush1.msra.mxu0 0.0
    %340 = vmatprep.subr.mxu0 0.0
    %341 = vmatpush1.msra.mxu0 0.0
    %342 = vmatprep.subr.mxu0 0.0
    %343 = vmatpush1.msra.mxu0 0.0
    %344 = vmatprep.subr.mxu0 0.0
    %345 = vmatpush1.msra.mxu0 0.0
    %346 = vmatprep.subr.mxu0 0.0
    %347 = vmatpush1.msra.mxu0 0.0
    %348 = vmatprep.subr.mxu0 0.0
    %349 = vmatpush1.msra.mxu0 0.0
    %350 = vmatprep.subr.mxu0 0.0
    %351 = vmatpush1.msra.mxu0 0.0
    %352 = vmatprep.subr.mxu0 0.0
    %353 = vmatpush1.msra.mxu0 0.0
    %354 = vmatprep.subr.mxu0 0.0
    %355 = vmatpush1.msra.mxu0 0.0
    %356 = vmatprep.subr.mxu0 0.0
    %357 = vmatpush1.msra.mxu0 0.0
    %358 = vmatprep.subr.mxu0 0.0
    %359 = vmatpush1.msra.mxu0 0.0
    %360 = vmatprep.subr.mxu0 0.0
    %361 = vmatpush1.msra.mxu0 0.0
    %362 = vmatprep.subr.mxu0 0.0
    %363 = vmatpush1.msra.mxu0 0.0
    %364 = vmatprep.subr.mxu0 0.0
    %365 = vmatpush1.msra.mxu0 0.0
    %366 = vmatprep.subr.mxu0 0.0
    %367 = vmatpush1.msra.mxu0 0.0
    %368 = vmatprep.subr.mxu0 0.0
    %369 = vmatpush1.msra.mxu0 0.0
    %370 = vmatprep.subr.mxu0 0.0
    %371 = vmatpush1.msra.mxu0 0.0
    %372 = vmatprep.subr.mxu0 0.0
    %373 = vmatpush1.msra.mxu0 0.0
    %374 = vmatprep.subr.mxu0 0.0
    %375 = vmatpush1.msra.mxu0 0.0
    %376 = vmatprep.subr.mxu0 0.0
    %377 = vmatpush1.msra.mxu0 0.0
    %378 = vmatprep.subr.mxu0 0.0
    %379 = vmatpush1.msra.mxu0 0.0
    %380 = vmatprep.subr.mxu0 0.0
    %381 = vmatpush1.msra.mxu0 0.0
    %382 = vmatprep.subr.mxu0 0.0
    %383 = vmatpush1.msra.mxu0 0.0
    %384 = vmatprep.subr.mxu0 0.0
    %385 = vmatpush1.msra.mxu0 0.0
    %386 = vmatprep.subr.mxu0 0.0
    %387 = vmatpush1.msra.mxu0 0.0
    %388 = vmatprep.subr.mxu0 0.0
    %389 = vmatpush1.msra.mxu0 0.0
    %390 = vmatprep.subr.mxu0 0.0
    %391 = vmatpush1.msra.mxu0 0.0
    %392 = vmatprep.subr.mxu0 0.0
    %393 = vmatpush1.msra.mxu0 0.0
    %394 = vmatprep.subr.mxu0 0.0
    %395 = vmatpush1.msra.mxu0 0.0
    %396 = vmatprep.subr.mxu0 0.0
    %397 = vmatpush1.msra.mxu0 0.0
    %398 = vmatprep.subr.mxu0 0.0
    %399 = vmatpush1.msra.mxu0 0.0
    %400 = vmatprep.mubr.f32.mxu0 0.0
    %401 = vmatmul.mubr.f32.gmra.mrb[0].mxu0 %v334
    %v402 = vpop.f32.mrb[0].mxu0
    %v403 = vadd.f32 0.0, %v402
    %v404 = vpop.f32.mrb[0].mxu0
    %405 = vdwg.mxu0
    %v406 = vadd.f32 %v33, %v330
    %v407 = vadd.f32 %v34, %v403
    %v408 = vsel %vm39, %v406, 0.0
    %409 = vadd.xlane.f32.xlu0 %v408
    %v410 = vpop.xlane.xlu0 %409
    %v411 = vsel %vm39, %v407, 0.0
    %412 = vadd.xlane.f32.xlu0 %v411
    %v413 = vpop.xlane.xlu0 %412
    %v414 = vmul.f32 %v410, %v46
    %v415 = vmul.f32 %v413, %v46
    %v416 = vsub.f32 %v406, %v414
    %v417 = vsub.f32 %v407, %v415
    %v418 = vmul.f32 %v416, %v416
    %v419 = vmul.f32 %v417, %v417
    %v420 = vsel %vm39, %v418, 0.0
    %421 = vadd.xlane.f32.xlu0 %v420
    %v422 = vpop.xlane.xlu0 %421
    %v423 = vsel %vm39, %v419, 0.0
    %424 = vadd.xlane.f32.xlu0 %v423
    %v425 = vpop.xlane.xlu0 %424
    %v426 = vmul.f32 %v422, %v46
    %v427 = vmul.f32 %v425, %v46
    %v428 = vadd.f32 %v426, 1e-05
    %v429 = vadd.f32 %v427, 1e-05
    %v430 = vrsqrt.pop %v428
    %v431 = vrsqrt.pop %v429
    %v432 = vmul.f32 %v416, %v430
    %v433 = vmul.f32 %v417, %v431
    %v435 = vlaneseq
    %v436 = vshrl.u32 %v435, 7
    %v437 = vsub.s32 0, %v436
    %v438 = vrot.slane %v37, %v437
    %v440 = vmul.f32 %v432, %v438
    %v441 = vmul.f32 %v433, %v438
    %v443 = vlaneseq
    %v444 = vshrl.u32 %v443, 7
    %v445 = vsub.s32 0, %v444
    %v446 = vrot.slane %v38, %v445
    %v448 = vadd.f32 %v440, %v446
    %v449 = vadd.f32 %v441, %v446
    %v450 = vld [vmem:[%s5] sm:$0xff]
    %v451 = vld [vmem:[%s5 + $0x8] sm:$0xff]
    %v452 = vld [vmem:[%s5 + $0x10] sm:$0xff]
    %v453 = vld [vmem:[%s5 + $0x18] sm:$0xff]
    %v454 = vld [vmem:[%s6] sm:$0x1]
    %v456 = vlaneseq
    %v457 = vshrl.u32 %v456, 7
    %v458 = vsub.s32 0, %v457
    %v459 = vrot.slane %v454, %v458
    %v462 = vsel %vm39, %v448, 0
    %v465 = vsel %vm39, %v449, 0
    %467 = vmatprep.subr.mxu0 0.0
    %468 = vmatpush1.msra.mxu0 %v450
    %469 = vmatprep.subr.mxu0 0.0
    %470 = vmatpush1.msra.mxu0 %v451
    %471 = vmatprep.subr.mxu0 0.0
    %472 = vmatpush1.msra.mxu0 %v452
    %473 = vmatprep.subr.mxu0 0.0
    %474 = vmatpush1.msra.mxu0 %v453
    %475 = vmatprep.subr.mxu0 0.0
    %476 = vmatpush1.msra.mxu0 0.0
    %477 = vmatprep.subr.mxu0 0.0
    %478 = vmatpush1.msra.mxu0 0.0
    %479 = vmatprep.subr.mxu0 0.0
    %480 = vmatpush1.msra.mxu0 0.0
    %481 = vmatprep.subr.mxu0 0.0
    %482 = vmatpush1.msra.mxu0 0.0
    %483 = vmatprep.subr.mxu0 0.0
    %484 = vmatpush1.msra.mxu0 0.0
    %485 = vmatprep.subr.mxu0 0.0
    %486 = vmatpush1.msra.mxu0 0.0
    %487 = vmatprep.subr.mxu0 0.0
    %488 = vmatpush1.msra.mxu0 0.0
    %489 = vmatprep.subr.mxu0 0.0
    %490 = vmatpush1.msra.mxu0 0.0
    %491 = vmatprep.subr.mxu0 0.0
    %492 = vmatpush1.msra.mxu0 0.0
    %493 = vmatprep.subr.mxu0 0.0
    %494 = vmatpush1.msra.mxu0 0.0
    %495 = vmatprep.subr.mxu0 0.0
    %496 = vmatpush1.msra.mxu0 0.0
    %497 = vmatprep.subr.mxu0 0.0
    %498 = vmatpush1.msra.mxu0 0.0
    %499 = vmatprep.subr.mxu0 0.0
    %500 = vmatpush1.msra.mxu0 0.0
    %501 = vmatprep.subr.mxu0 0.0
    %502 = vmatpush1.msra.mxu0 0.0
    %503 = vmatprep.subr.mxu0 0.0
    %504 = vmatpush1.msra.mxu0 0.0
    %505 = vmatprep.subr.mxu0 0.0
    %506 = vmatpush1.msra.mxu0 0.0
    %507 = vmatprep.subr.mxu0 0.0
    %508 = vmatpush1.msra.mxu0 0.0
    %509 = vmatprep.subr.mxu0 0.0
    %510 = vmatpush1.msra.mxu0 0.0
    %511 = vmatprep.subr.mxu0 0.0
    %512 = vmatpush1.msra.mxu0 0.0
    %513 = vmatprep.subr.mxu0 0.0
    %514 = vmatpush1.msra.mxu0 0.0
    %515 = vmatprep.subr.mxu0 0.0
    %516 = vmatpush1.msra.mxu0 0.0
    %517 = vmatprep.subr.mxu0 0.0
    %518 = vmatpush1.msra.mxu0 0.0
    %519 = vmatprep.subr.mxu0 0.0
    %520 = vmatpush1.msra.mxu0 0.0
    %521 = vmatprep.subr.mxu0 0.0
    %522 = vmatpush1.msra.mxu0 0.0
    %523 = vmatprep.subr.mxu0 0.0
    %524 = vmatpush1.msra.mxu0 0.0
    %525 = vmatprep.subr.mxu0 0.0
    %526 = vmatpush1.msra.mxu0 0.0
    %527 = vmatprep.subr.mxu0 0.0
    %528 = vmatpush1.msra.mxu0 0.0
    %529 = vmatprep.subr.mxu0 0.0
    %530 = vmatpush1.msra.mxu0 0.0
    %531 = vmatprep.mubr.f32.mxu0 0.0
    %532 = vmatmul.mubr.f32.gmra.mrb[0].mxu0 %v462
    %v533 = vpop.f32.mrb[0].mxu0
    %v534 = vadd.f32 %v459, %v533
    %v535 = vpop.f32.mrb[0].mxu0
    %536 = vmatprep.mubr.f32.mxu0 0.0
    %537 = vmatmul.mubr.f32.gmra.mrb[0].mxu0 %v465
    %v538 = vpop.f32.mrb[0].mxu0
    %v539 = vadd.f32 %v459, %v538
    %v540 = vpop.f32.mrb[0].mxu0
    %541 = vdwg.mxu0
    %v542 = vmax.f32 %v534, 0.0
    %v543 = vmax.f32 %v539, 0.0
    %v544 = vld [vmem:[%s7] sm:$0xff]
    %v545 = vld [vmem:[%s7 + $0x8] sm:$0xff]
    %v546 = vld [vmem:[%s7 + $0x10] sm:$0xff]
    %v547 = vld [vmem:[%s7 + $0x18] sm:$0xff]
    %v548 = vld [vmem:[%s7 + $0x20] sm:$0xff]
    %v549 = vld [vmem:[%s7 + $0x28] sm:$0xff]
    %v550 = vld [vmem:[%s7 + $0x30] sm:$0xff]
    %v551 = vld [vmem:[%s7 + $0x38] sm:$0xff]
    %v552 = vld [vmem:[%s7 + $0x40] sm:$0xff]
    %v553 = vld [vmem:[%s7 + $0x48] sm:$0xff]
    %v554 = vld [vmem:[%s7 + $0x50] sm:$0xff]
    %v555 = vld [vmem:[%s7 + $0x58] sm:$0xff]
    %v556 = vld [vmem:[%s7 + $0x60] sm:$0xff]
    %v557 = vld [vmem:[%s7 + $0x68] sm:$0xff]
    %v558 = vld [vmem:[%s7 + $0x70] sm:$0xff]
    %v559 = vld [vmem:[%s7 + $0x78] sm:$0xff]
    %v560 = vld [vmem:[%s8] sm:$0x1]
    %v562 = vlaneseq
    %v563 = vshrl.u32 %v562, 7
    %v564 = vsub.s32 0, %v563
    %v565 = vrot.slane %v560, %v564
    %567 = vmatprep.subr.mxu0 0.0
    %568 = vmatpush1.msra.mxu0 %v544
    %569 = vmatprep.subr.mxu0 0.0
    %570 = vmatpush1.msra.mxu0 %v545
    %571 = vmatprep.subr.mxu0 0.0
    %572 = vmatpush1.msra.mxu0 %v546
    %573 = vmatprep.subr.mxu0 0.0
    %574 = vmatpush1.msra.mxu0 %v547
    %575 = vmatprep.subr.mxu0 0.0
    %576 = vmatpush1.msra.mxu0 %v548
    %577 = vmatprep.subr.mxu0 0.0
    %578 = vmatpush1.msra.mxu0 %v549
    %579 = vmatprep.subr.mxu0 0.0
    %580 = vmatpush1.msra.mxu0 %v550
    %581 = vmatprep.subr.mxu0 0.0
    %582 = vmatpush1.msra.mxu0 %v551
    %583 = vmatprep.subr.mxu0 0.0
    %584 = vmatpush1.msra.mxu0 %v552
    %585 = vmatprep.subr.mxu0 0.0
    %586 = vmatpush1.msra.mxu0 %v553
    %587 = vmatprep.subr.mxu0 0.0
    %588 = vmatpush1.msra.mxu0 %v554
    %589 = vmatprep.subr.mxu0 0.0
    %590 = vmatpush1.msra.mxu0 %v555
    %591 = vmatprep.subr.mxu0 0.0
    %592 = vmatpush1.msra.mxu0 %v556
    %593 = vmatprep.subr.mxu0 0.0
    %594 = vmatpush1.msra.mxu0 %v557
    %595 = vmatprep.subr.mxu0 0.0
    %596 = vmatpush1.msra.mxu0 %v558
    %597 = vmatprep.subr.mxu0 0.0
    %598 = vmatpush1.msra.mxu0 %v559
    %599 = vmatprep.subr.mxu0 0.0
    %600 = vmatpush1.msra.mxu0 0.0
    %601 = vmatprep.subr.mxu0 0.0
    %602 = vmatpush1.msra.mxu0 0.0
    %603 = vmatprep.subr.mxu0 0.0
    %604 = vmatpush1.msra.mxu0 0.0
    %605 = vmatprep.subr.mxu0 0.0
    %606 = vmatpush1.msra.mxu0 0.0
    %607 = vmatprep.subr.mxu0 0.0
    %608 = vmatpush1.msra.mxu0 0.0
    %609 = vmatprep.subr.mxu0 0.0
    %610 = vmatpush1.msra.mxu0 0.0
    %611 = vmatprep.subr.mxu0 0.0
    %612 = vmatpush1.msra.mxu0 0.0
    %613 = vmatprep.subr.mxu0 0.0
    %614 = vmatpush1.msra.mxu0 0.0
    %615 = vmatprep.subr.mxu0 0.0
    %616 = vmatpush1.msra.mxu0 0.0
    %617 = vmatprep.subr.mxu0 0.0
    %618 = vmatpush1.msra.mxu0 0.0
    %619 = vmatprep.subr.mxu0 0.0
    %620 = vmatpush1.msra.mxu0 0.0
    %621 = vmatprep.subr.mxu0 0.0
    %622 = vmatpush1.msra.mxu0 0.0
    %623 = vmatprep.subr.mxu0 0.0
    %624 = vmatpush1.msra.mxu0 0.0
    %625 = vmatprep.subr.mxu0 0.0
    %626 = vmatpush1.msra.mxu0 0.0
    %627 = vmatprep.subr.mxu0 0.0
    %628 = vmatpush1.msra.mxu0 0.0
    %629 = vmatprep.subr.mxu0 0.0
    %630 = vmatpush1.msra.mxu0 0.0
    %631 = vmatprep.mubr.f32.mxu0 0.0
    %632 = vmatmul.mubr.f32.gmra.mrb[0].mxu0 %v542
    %v633 = vpop.f32.mrb[0].mxu0
    %v634 = vadd.f32 %v565, %v633
    %v635 = vpop.f32.mrb[0].mxu0
    %636 = vmatprep.mubr.f32.mxu0 0.0
    %637 = vmatmul.mubr.f32.gmra.mrb[0].mxu0 %v543
    %v638 = vpop.f32.mrb[0].mxu0
    %v639 = vadd.f32 %v565, %v638
    %v640 = vpop.f32.mrb[0].mxu0
    %641 = vdwg.mxu0
    %v642 = vadd.f32 %v406, %v634
    %v643 = vadd.f32 %v407, %v639
    %644 = vst.msk [vmem:[#allocation2] sm:$0xff] %vm39, %v642
    %645 = vst.msk [vmem:[#allocation2 + $0x8] sm:$0xff] %vm39, %v643
    // Predicated region
    $region38: #{tpu_custom_call.1} parent=1 // pred_check
      _
    $region39: #{tpu_custom_call.1} parent=1 // pred_check_branch
      %647 = sbr.rel (0) target = $region41
    $region40: #{tpu_custom_call.1} parent=1 // pred_region
      %s649 = ssub.s32 256, 256
      %650 = vsyncadd [#allocation3], %s649
      %s651 = sshll.u32 [#allocation2], 4
      %s652 = int_to_ptr.vmem [resolvable:$true] %s651
      %657 = dma.vmem_to_hbm [thread:$0]  %s652, 256, %s9, [#allocation3], 128, 128, 8
    $region41: #{tpu_custom_call.1} parent=1 // pred_fallthru
      _
    // Predicated region
    $region42: #{tpu_custom_call.1} parent=1 // pred_check
      _
    $region43: #{tpu_custom_call.1} parent=1 // pred_check_branch
      %659 = sbr.rel (0) target = $region45
    $region44: #{tpu_custom_call.1} parent=1 // pred_region
      %660 = dma.done [#allocation3], 256
    $region45: #{tpu_custom_call.1} parent=1 // pred_fallthru
      _
    %661 = vsyncpa [#allocation3], 1

</llo_original>
